<compile_context>
chip_gen: v7x
topology: tpu7x:2x2x1
jax: 0.10.0
libtpu: 0.0.40
codegen_flags: <defaults>
</compile_context>

<pallas_src>
import jax
import jax.numpy as jnp
from jax.experimental import pallas as pl
from jax.experimental.pallas import tpu as pltpu

_LANE = 128


def _quant_kernel(params_ref, x_ref, o_ref):
    # params_ref (SMEM, f32[3]): [delta, zero_point, qmax]
    delta = params_ref[0]
    zero_point = params_ref[1]
    qmax = params_ref[2]

    x = x_ref[...].astype(jnp.float32)
    x_int = jnp.round(x / delta) + zero_point
    x_quant = jnp.clip(x_int, 0.0, qmax)
    o_ref[...] = ((x_quant - zero_point) * delta).astype(o_ref.dtype)


def uniform_affine_quantize(x, delta, zero_point, n_bits: int = 8,
                            block_bytes: int = 2 * 1024 * 1024):
    """UniformAffineQuantizer forward pass (inited, eval mode, prob=1.0)."""
    orig_shape = x.shape
    dtype = x.dtype
    n = x.size
    n_levels = 2 ** n_bits

    itemsize = jnp.dtype(dtype).itemsize
    # Sublane multiple per dtype packing: 8 (f32), 16 (bf16), 32 (int8).
    sub = max(8, 32 // itemsize)

    # Lane-dense 2-D slab: a wide last dim (large multiple of 128) gives
    # unmasked full-width stores; fall back to 128 lanes for tiny inputs so we
    # don't pad more than necessary.
    width = 8 * _LANE if n >= 8 * _LANE * sub else _LANE

    rows = -(-n // width)
    rows = -(-rows // sub) * sub                 # sublane-align row count

    # Largest block that keeps in + out double buffering (4 buffers of
    # block_bytes) comfortably under the scoped-VMEM defaults on v5e/v6e/v7x.
    max_block_rows = max(sub, (block_bytes // (width * itemsize)) // sub * sub)
    tm = min(rows, max_block_rows)
    rows = -(-rows // tm) * tm                   # grid divides evenly

    n_pad = rows * width
    flat = x.reshape(-1)
    if n_pad != n:
        flat = jnp.pad(flat, (0, n_pad - n))     # only when actually needed
    x2d = flat.reshape(rows, width)

    params = jnp.stack([
        jnp.asarray(delta, dtype=jnp.float32).reshape(()),
        jnp.asarray(zero_point, dtype=jnp.float32).reshape(()),
        jnp.asarray(float(n_levels - 1), dtype=jnp.float32).reshape(()),
    ])

    grid = (rows // tm,)
    out2d = pl.pallas_call(
        _quant_kernel,
        out_shape=jax.ShapeDtypeStruct((rows, width), dtype),
        grid_spec=pltpu.PrefetchScalarGridSpec(
            num_scalar_prefetch=0,
            grid=grid,
            in_specs=[
                pl.BlockSpec(memory_space=pltpu.MemorySpace.SMEM),  # params
                pl.BlockSpec((tm, width), lambda i: (i, 0)),        # x tile
            ],
            out_specs=pl.BlockSpec((tm, width), lambda i: (i, 0)),
        ),
        compiler_params=pltpu.CompilerParams(
            dimension_semantics=("parallel",),   # shard grid across TCs (v7x)
        ),
    )(params, x2d)

    if n_pad == n:
        return out2d.reshape(orig_shape)
    return out2d.reshape(-1)[:n].reshape(orig_shape)


if __name__ == "__main__":
    key = jax.random.PRNGKey(0)
    x = jax.random.normal(key, (2, 4, 16, 16), dtype=jnp.float32)

    n_bits = 8
    n_levels = 2 ** n_bits

    # Quantization params as in UniformAffineQuantizer.calculate_qparams
    # (one-time init, done outside the per-forward kernel).
    x_min = jnp.minimum(jnp.min(x), 0.0)
    x_max = jnp.maximum(jnp.max(x), 0.0)
    delta = jnp.maximum((x_max - x_min) / float(n_levels - 1), 1e-8)
    zero_point = jnp.clip(-jnp.round(x_min / delta), 0.0, float(n_levels - 1))

    y = uniform_affine_quantize(x, delta, zero_point, n_bits=n_bits)
    jax.block_until_ready(y)

    # Pure-JAX reference of the PyTorch forward path.
    x_int = jnp.round(x / delta) + zero_point
    x_quant = jnp.clip(x_int, 0.0, float(n_levels - 1))
    y_ref = (x_quant - zero_point) * delta

    assert y.shape == x.shape, (y.shape, x.shape)
    assert y.dtype == x.dtype, (y.dtype, x.dtype)
    max_err = float(jnp.max(jnp.abs(y - y_ref)))
    assert jnp.allclose(y, y_ref, atol=1e-5, rtol=0.0), max_err

    print("KERNEL_OK")
</pallas_src>

<mosaic_0001>
module attributes {stable_mosaic.version = 11 : i64} {
  func.func @_quant_kernel(%arg0: i32, %arg1: memref<3xf32, #tpu.memory_space<smem>>, %arg2: memref<16x128xf32, #tpu.memory_space<vmem>>, %arg3: memref<16x128xf32, #tpu.memory_space<vmem>>) attributes {dimension_semantics = [#tpu.dimension_semantics<parallel>], iteration_bounds = array<i64: 1>, scalar_prefetch = 0 : i64, scratch_operands = 0 : i64, tpu.core_type = #tpu.core_type<tc>, window_params = [{transform_indices = @transform_0, window_bounds = array<i64: 3>}, {transform_indices = @transform_1, window_bounds = array<i64: 16, 128>}, {transform_indices = @transform_2, window_bounds = array<i64: 16, 128>}]} {
    %c0 = arith.constant 0 : index
    %0 = memref.load %arg1[%c0] : memref<3xf32, #tpu.memory_space<smem>>
    %c1 = arith.constant 1 : index
    %1 = memref.load %arg1[%c1] : memref<3xf32, #tpu.memory_space<smem>>
    %c2 = arith.constant 2 : index
    %2 = memref.load %arg1[%c2] : memref<3xf32, #tpu.memory_space<smem>>
    %c0_0 = arith.constant 0 : index
    %c0_1 = arith.constant 0 : index
    %3 = vector.load %arg2[%c0_0, %c0_1] : memref<16x128xf32, #tpu.memory_space<vmem>>, vector<16x128xf32>
    %4 = vector.broadcast %0 : f32 to vector<16x128xf32>
    %5 = arith.divf %3, %4 : vector<16x128xf32>
    %6 = math.roundeven %5 : vector<16x128xf32>
    %7 = vector.broadcast %1 : f32 to vector<16x128xf32>
    %8 = arith.addf %6, %7 : vector<16x128xf32>
    %cst = arith.constant 0.000000e+00 : f32
    %9 = vector.broadcast %cst : f32 to vector<16x128xf32>
    %10 = arith.maximumf %9, %8 : vector<16x128xf32>
    %11 = vector.broadcast %2 : f32 to vector<16x128xf32>
    %12 = arith.minimumf %11, %10 : vector<16x128xf32>
    %13 = vector.broadcast %1 : f32 to vector<16x128xf32>
    %14 = arith.subf %12, %13 : vector<16x128xf32>
    %15 = vector.broadcast %0 : f32 to vector<16x128xf32>
    %16 = arith.mulf %14, %15 : vector<16x128xf32>
    %c0_2 = arith.constant 0 : index
    %c0_3 = arith.constant 0 : index
    %17 = vector.load %arg3[%c0_2, %c0_3] : memref<16x128xf32, #tpu.memory_space<vmem>>, vector<16x128xf32>
    tpu.vector_store %arg3[%c0_2, %c0_3], %16 {strides = array<i32>} : memref<16x128xf32, #tpu.memory_space<vmem>>, vector<16x128xf32>,
    return
  }
  func.func @transform_0(%arg0: i32) -> i32 {
    %c0_i32 = arith.constant 0 : i32
    %c0_i32_0 = arith.constant 0 : i32
    return %c0_i32 : i32
  }
  func.func @transform_1(%arg0: i32) -> (i32, i32) {
    %c0_i32 = arith.constant 0 : i32
    %c0_i32_0 = arith.constant 0 : i32
    return %arg0, %c0_i32 : i32, i32
  }
  func.func @transform_2(%arg0: i32) -> (i32, i32) {
    %c0_i32 = arith.constant 0 : i32
    %c0_i32_0 = arith.constant 0 : i32
    return %arg0, %c0_i32 : i32, i32
  }
}

</mosaic_0001>

<llo_original>
// kernel: tpu_custom_call.1
$region0: #{tpu_custom_call.1}
  #allocation0 [shape = 'u32[]', space=smem, size = 0x4, offset = 0x4, fixed_abs, tag = 'smem constant byte address 0x4 - core index']
  #allocation1 [shape = 'u32[144,128]{1,0:T(1,128)}', space=vmem, size = 0x12000, scoped, tag = 'internal scratch']
  %s0 = inlined_call_operand.hbm [shape: f32[3], index: 0, kind: input, shape index: {}]
  %s1 = inlined_call_operand.hbm [shape: f32[16,128], index: 1, kind: input, shape index: {}]
  %s2 = inlined_call_operand.hbm [shape: f32[16,128], index: 2, kind: output, shape index: {}]
  %s3 = sld [smem:[#allocation0]]
  $region26: #{tpu_custom_call.1} parent=0
    _
  %s5 = ssub.s32 1, %s3
  %s6 = scalar_select 0, %s5, %s3
  $region1: #{tpu_custom_call.1} parent=0
    #allocation2 [shape = 'u8[512]{0}', space=smem, size = 0x200, scoped, tag = 'input window, operand 0, single buffered']
    #allocation3 [shape = 's32[1]{0}', space=sflag, size = 0x4, scoped, tag = 'scoped memory for tpu_custom_call.1']
    #allocation4 [shape = 's32[1]{0}', space=sflag, size = 0x4, scoped, tag = 'scoped memory for tpu_custom_call.1']
    #allocation5 [shape = 's32[1]{0}', space=sflag, size = 0x4, scoped, tag = 'scoped memory for tpu_custom_call.1']
    #allocation6 [shape = 'u8[8192]{0}', space=vmem, size = 0x2000, scoped, tag = 'input window, operand 1, single buffered']
    #allocation7 [shape = 'u8[8192]{0}', space=vmem, size = 0x2000, scoped, tag = 'output window, operand 0, single buffered']
    %7 = vsyncpa [#allocation5], 0
    %8 = vsyncpa [#allocation3], 0
    %9 = vsyncpa [#allocation4], 0
    // Predicated region
    $region2: #{tpu_custom_call.1} parent=1 // pred_check
      _
    $region3: #{tpu_custom_call.1} parent=1 // pred_check_branch
      %11 = sbr.rel (0) target = $region5
    $region4: #{tpu_custom_call.1} parent=1 // pred_region
      %s13 = ssub.s32 16, 16
      %14 = vsyncadd [#allocation5], %s13
      %17 = dma.hbm_to_smem %s0, 16, [#allocation2], [#allocation5]
    $region5: #{tpu_custom_call.1} parent=1 // pred_fallthru
      _
    // Predicated region
    $region6: #{tpu_custom_call.1} parent=1 // pred_check
      _
    $region7: #{tpu_custom_call.1} parent=1 // pred_check_branch
      %19 = sbr.rel (0) target = $region9
    $region8: #{tpu_custom_call.1} parent=1 // pred_region
      %s21 = ssub.s32 256, 256
      %22 = vsyncadd [#allocation3], %s21
      %s23 = sshll.u32 [#allocation6], 4
      %s24 = int_to_ptr.vmem [resolvable:$true] %s23
      %29 = dma.hbm_to_vmem [thread:$0]  %s1, 256, %s24, [#allocation3], 128, 128, 8
    $region9: #{tpu_custom_call.1} parent=1 // pred_fallthru
      _
    // Predicated region
    $region10: #{tpu_custom_call.1} parent=1 // pred_check
      _
    $region11: #{tpu_custom_call.1} parent=1 // pred_check_branch
      %31 = sbr.rel (0) target = $region13
    $region12: #{tpu_custom_call.1} parent=1 // pred_region
      %32 = dma.done [#allocation5], 16
    $region13: #{tpu_custom_call.1} parent=1 // pred_fallthru
      _
    // Predicated region
    $region14: #{tpu_custom_call.1} parent=1 // pred_check
      _
    $region15: #{tpu_custom_call.1} parent=1 // pred_check_branch
      %34 = sbr.rel (0) target = $region17
    $region16: #{tpu_custom_call.1} parent=1 // pred_region
      %35 = dma.done [#allocation3], 256
    $region17: #{tpu_custom_call.1} parent=1 // pred_fallthru
      _
    %36 = sfence
    %s37 = sld [smem:[#allocation2]]
    %s38 = sld [smem:[#allocation2 + $0x1]]
    %s39 = sld [smem:[#allocation2 + $0x2]]
    %v40 = vld [vmem:[#allocation6] sm:$0xff]
    %v41 = vld [vmem:[#allocation6 + $0x8] sm:$0xff]
    %v42 = vstv %s37
    %v43 = vrcp.pop %v42
    %v44 = vmul.f32 %v40, %v43
    %v45 = vmul.f32 %v41, %v43
    %v46 = vround.ne.pseudo %v44
    %v47 = vround.ne.pseudo %v45
    %v48 = vstv %s38
    %v49 = vadd.f32 %v46, %v48
    %v50 = vadd.f32 %v47, %v48
    %v51 = vmax.f32 %v49, 0.0
    %v52 = vmax.f32 %v50, 0.0
    %v53 = vstv %s39
    %v54 = vmin.f32 %v53, %v51
    %v55 = vmin.f32 %v53, %v52
    %v56 = vsub.f32 %v54, %v48
    %v57 = vsub.f32 %v55, %v48
    %v58 = vmul.f32 %v56, %v42
    %v59 = vmul.f32 %v57, %v42
    %60 = vst [vmem:[#allocation7] sm:$0xff] %v58
    %61 = vst [vmem:[#allocation7 + $0x8] sm:$0xff] %v59
    // Predicated region
    $region18: #{tpu_custom_call.1} parent=1 // pred_check
      _
    $region19: #{tpu_custom_call.1} parent=1 // pred_check_branch
      %63 = sbr.rel (0) target = $region21
    $region20: #{tpu_custom_call.1} parent=1 // pred_region
      %s65 = ssub.s32 256, 256
      %66 = vsyncadd [#allocation4], %s65
      %s67 = sshll.u32 [#allocation7], 4
      %s68 = int_to_ptr.vmem [resolvable:$true] %s67
      %73 = dma.vmem_to_hbm [thread:$0]  %s68, 256, %s2, [#allocation4], 128, 128, 8
    $region21: #{tpu_custom_call.1} parent=1 // pred_fallthru
      _
    // Predicated region
    $region22: #{tpu_custom_call.1} parent=1 // pred_check
      _
    $region23: #{tpu_custom_call.1} parent=1 // pred_check_branch
      %75 = sbr.rel (0) target = $region25
    $region24: #{tpu_custom_call.1} parent=1 // pred_region
      %76 = dma.done [#allocation4], 256
    $region25: #{tpu_custom_call.1} parent=1 // pred_fallthru
      _
    %77 = vsyncpa [#allocation3], 1
    %78 = vsyncpa [#allocation4], 1
    %79 = vsyncpa [#allocation5], 1

</llo_original>
